<compile_context>
chip_gen: v7x
topology: tpu7x:2x2x1
jax: 0.10.0
libtpu: 0.0.40
codegen_flags: <defaults>
</compile_context>

<pallas_src>
import functools

import jax
import jax.numpy as jnp
from jax.experimental import pallas as pl
from jax.experimental.pallas import tpu as pltpu


def _round_up(x, m):
    return ((x + m - 1) // m) * m


def sub_block_kernel(x_ref, w_ref, o_ref, stk_ref, *, K, cin_p):
    # x_ref:   (cin_p, B)           f32 zero-padded input, B = seg_per_blk * Lo
    # w_ref:   (Cout, K*cin_p + 8)  bf16 folded weights; column K*cin_p = folded shift
    # o_ref:   (Cout, B)            f32 lane-dense output; lanes l >= L_out of each
    #                               segment are garbage and sliced off in the wrapper
    # stk_ref: (K*cin_p + 8, B)     f32 VMEM scratch: K rolled copies of x + ones row
    B = x_ref.shape[1]
    x = x_ref[...]                                     # single load of the block

    # Stack the K shifted views of x along sublanes.  pltpu.roll keeps everything
    # lane-dense (no lane-crossing slices); wrap-around only hits padded tail lanes.
    stk_ref[pl.ds(0, cin_p), :] = x
    for k in range(1, K):
        stk_ref[pl.ds(k * cin_p, cin_p), :] = pltpu.roll(x, B - k, axis=1)

    # Ones row (row 0 of the trailing 8-sublane group) so the folded shift is
    # absorbed by the MXU contraction; remaining rows zero (zero weight columns).
    row_id = jax.lax.broadcasted_iota(jnp.int32, (8, B), 0)
    stk_ref[pl.ds(K * cin_p, 8), :] = (row_id == 0).astype(jnp.float32)

    # Single MXU dot = depthwise conv + 1x1 conv + BN + all biases.  bf16 operands,
    # f32 accumulation (v5e/v6e-native matmul).  Then ReLU and a lane-dense store.
    y = jnp.dot(w_ref[...], stk_ref[...].astype(jnp.bfloat16),
                preferred_element_type=jnp.float32)    # (Cout, B)
    o_ref[...] = jnp.maximum(y, 0.0).astype(o_ref.dtype)


def sub_block_forward(x, w_dw, b_dw, w_pw, b_pw, gamma, beta, mean, var, eps=1e-5):
    # x: (N, Cin, L); w_dw: (Cin, K)  [PyTorch (Cin,1,K) squeezed]
    # w_pw: (Cout, Cin)               [PyTorch (Cout,Cin,1) squeezed]
    # Returns (N, Cout, L-K+1) float32.
    N, Cin, L = x.shape
    Cout = w_pw.shape[0]
    K = w_dw.shape[1]
    L_out = L - K + 1

    # ---- fold BN + both conv biases + depthwise taps into one weight matrix ----
    scale = gamma / jnp.sqrt(var + eps)                                   # (Cout,)
    shift_fold = (beta - mean * scale) + scale * (w_pw @ b_dw + b_pw)     # (Cout,)
    cin_p = _round_up(Cin, 8)                        # sublane-aligned channel count
    # w_eff[o, k, c] = scale[o] * w_pw[o, c] * w_dw[c, k]
    w_eff = (w_pw * scale[:, None])[:, None, :] * w_dw.T[None, :, :]      # (Cout,K,Cin)
    w_eff = jnp.pad(w_eff, ((0, 0), (0, 0), (0, cin_p - Cin)))            # (Cout,K,cin_p)
    shift_blk = jnp.zeros((Cout, 8), jnp.float32).at[:, 0].set(shift_fold)
    w_full = jnp.concatenate(
        [w_eff.reshape(Cout, K * cin_p), shift_blk], axis=1
    ).astype(jnp.bfloat16)                                                # (Cout,K*cin_p+8)

    # ---- lane-dense, batch-in-lanes layout: (cin_p, N*Lo) with Lo % 128 == 0 ----
    # Lo >= L guarantees roll wrap-around only touches lanes l >= L_out (garbage).
    Lo = _round_up(L, 128)
    x_p = jnp.pad(x, ((0, 0), (0, cin_p - Cin), (0, Lo - L)))             # (N,cin_p,Lo)
    x_flat = x_p.transpose(1, 0, 2).reshape(cin_p, N * Lo).astype(jnp.float32)

    # Grid over groups of batch segments (>=512-lane blocks when N allows); marked
    # "parallel" for v7x's 2 TensorCores; blocks stay small vs. 64 MiB VMEM.
    seg_per_blk = min(N, max(1, 512 // Lo))
    while N % seg_per_blk:
        seg_per_blk -= 1
    n_blocks = N // seg_per_blk
    blk = seg_per_blk * Lo

    kernel = functools.partial(sub_block_kernel, K=K, cin_p=cin_p)
    out_flat = pl.pallas_call(
        kernel,
        out_shape=jax.ShapeDtypeStruct((Cout, N * Lo), jnp.float32),
        grid_spec=pltpu.PrefetchScalarGridSpec(
            num_scalar_prefetch=0,
            grid=(n_blocks,),
            in_specs=[
                pl.BlockSpec((cin_p, blk), lambda i: (0, i)),
                pl.BlockSpec((Cout, K * cin_p + 8), lambda i: (0, 0)),
            ],
            out_specs=pl.BlockSpec((Cout, blk), lambda i: (0, i)),
            scratch_shapes=[pltpu.VMEM((K * cin_p + 8, blk), jnp.float32)],
        ),
        compiler_params=pltpu.CompilerParams(
            dimension_semantics=("parallel",)),
    )(x_flat, w_full)

    # Undo the layout plumbing; drop the padded (garbage) lanes.
    out = out_flat.reshape(Cout, N, Lo).transpose(1, 0, 2)
    return out[:, :, :L_out]


def ref_forward(x, w_dw, b_dw, w_pw, b_pw, gamma, beta, mean, var, eps=1e-5):
    # Pure-JAX f32 reference of the same eval-mode forward.
    N, Cin, L = x.shape
    K = w_dw.shape[1]
    L_out = L - K + 1
    y1 = jnp.zeros((N, Cin, L_out), jnp.float32)
    for k in range(K):
        y1 = y1 + x[:, :, k:k + L_out] * w_dw[None, :, k:k + 1]
    y1 = y1 + b_dw[None, :, None]
    y2 = jnp.einsum('oc,ncl->nol', w_pw, y1) + b_pw[None, :, None]
    scale = gamma / jnp.sqrt(var + eps)
    shift = beta - mean * scale
    return jnp.maximum(y2 * scale[None, :, None] + shift[None, :, None], 0.0)


if __name__ == "__main__":
    # Small shapes implied by the module: Conv1d input is (N, C_in, L).
    N, Cin, Cout, L, K = 2, 4, 8, 16, 3

    key = jax.random.PRNGKey(0)
    kx, k1, k2, k3, k4, k5, k6, k7, k8 = jax.random.split(key, 9)

    x     = jax.random.normal(kx, (N, Cin, L), jnp.float32)
    w_dw  = jax.random.normal(k1, (Cin, K), jnp.float32) * 0.3      # (Cin,1,K) squeezed
    b_dw  = jax.random.normal(k2, (Cin,), jnp.float32) * 0.1
    w_pw  = jax.random.normal(k3, (Cout, Cin), jnp.float32) * 0.3   # (Cout,Cin,1) squeezed
    b_pw  = jax.random.normal(k4, (Cout,), jnp.float32) * 0.1
    gamma = 1.0 + 0.1 * jax.random.normal(k5, (Cout,), jnp.float32)
    beta  = 0.1 * jax.random.normal(k6, (Cout,), jnp.float32)
    mean  = 0.1 * jax.random.normal(k7, (Cout,), jnp.float32)
    var   = jnp.abs(jax.random.normal(k8, (Cout,), jnp.float32)) + 0.5

    out = sub_block_forward(x, w_dw, b_dw, w_pw, b_pw, gamma, beta, mean, var)
    out = jax.block_until_ready(out)

    ref = ref_forward(x, w_dw, b_dw, w_pw, b_pw, gamma, beta, mean, var)
    assert out.shape == (N, Cout, L - K + 1)
    # bf16 MXU operands (f32 accumulation) -> loosened tolerance vs. f32 reference.
    assert jnp.allclose(out, ref, atol=5e-2, rtol=5e-2), "mismatch vs reference"

    print("KERNEL_OK")
</pallas_src>

<mosaic_0001>
module attributes {stable_mosaic.version = 11 : i64} {
  func.func @sub_block_kernel(%arg0: i32, %arg1: memref<8x256xf32, #tpu.memory_space<vmem>>, %arg2: memref<8x32xbf16, #tpu.memory_space<vmem>>, %arg3: memref<8x256xf32, #tpu.memory_space<vmem>>, %arg4: memref<32x256xf32, #tpu.memory_space<vmem>>) attributes {dimension_semantics = [#tpu.dimension_semantics<parallel>], iteration_bounds = array<i64: 1>, scalar_prefetch = 0 : i64, scratch_operands = 1 : i64, tpu.core_type = #tpu.core_type<tc>, window_params = [{transform_indices = @transform_0, window_bounds = array<i64: 8, 256>}, {pipeline_mode = #tpu.pipeline_mode<synchronous>, transform_indices = @transform_1, window_bounds = array<i64: 8, 32>}, {transform_indices = @transform_2, window_bounds = array<i64: 8, 256>}]} {
    %c0 = arith.constant 0 : index
    %c0_0 = arith.constant 0 : index
    %0 = vector.load %arg1[%c0, %c0_0] : memref<8x256xf32, #tpu.memory_space<vmem>>, vector<8x256xf32>
    %c0_1 = arith.constant 0 : index
    %c0_2 = arith.constant 0 : index
    %1 = vector.load %arg4[%c0_1, %c0_2] : memref<32x256xf32, #tpu.memory_space<vmem>>, vector<8x256xf32>
    tpu.vector_store %arg4[%c0_1, %c0_2], %0 {strides = array<i32>} : memref<32x256xf32, #tpu.memory_space<vmem>>, vector<8x256xf32>,
    %c255_i32 = arith.constant 255 : i32
    %2 = tpu.dynamic_rotate %0 by %c255_i32 dim 1 : vector<8x256xf32>, i32 -> vector<8x256xf32>
    %c8 = arith.constant 8 : index
    %c0_3 = arith.constant 0 : index
    %3 = vector.load %arg4[%c8, %c0_3] : memref<32x256xf32, #tpu.memory_space<vmem>>, vector<8x256xf32>
    tpu.vector_store %arg4[%c8, %c0_3], %2 {strides = array<i32>} : memref<32x256xf32, #tpu.memory_space<vmem>>, vector<8x256xf32>,
    %c254_i32 = arith.constant 254 : i32
    %4 = tpu.dynamic_rotate %0 by %c254_i32 dim 1 : vector<8x256xf32>, i32 -> vector<8x256xf32>
    %c16 = arith.constant 16 : index
    %c0_4 = arith.constant 0 : index
    %5 = vector.load %arg4[%c16, %c0_4] : memref<32x256xf32, #tpu.memory_space<vmem>>, vector<8x256xf32>
    tpu.vector_store %arg4[%c16, %c0_4], %4 {strides = array<i32>} : memref<32x256xf32, #tpu.memory_space<vmem>>, vector<8x256xf32>,
    %6 = tpu.iota {dimensions = array<i32: 0>} : vector<8x256xi32>
    %c0_i32 = arith.constant 0 : i32
    %7 = vector.broadcast %c0_i32 : i32 to vector<8x256xi32>
    %8 = arith.cmpi eq, %6, %7 : vector<8x256xi32>
    %9 = arith.extui %8 : vector<8x256xi1> to vector<8x256xi32>
    %10 = arith.sitofp %9 : vector<8x256xi32> to vector<8x256xf32>
    %c24 = arith.constant 24 : index
    %c0_5 = arith.constant 0 : index
    %11 = vector.load %arg4[%c24, %c0_5] : memref<32x256xf32, #tpu.memory_space<vmem>>, vector<8x256xf32>
    tpu.vector_store %arg4[%c24, %c0_5], %10 {strides = array<i32>} : memref<32x256xf32, #tpu.memory_space<vmem>>, vector<8x256xf32>,
    %c0_6 = arith.constant 0 : index
    %c0_7 = arith.constant 0 : index
    %12 = vector.load %arg2[%c0_6, %c0_7] : memref<8x32xbf16, #tpu.memory_space<vmem>>, vector<8x32xbf16>
    %c0_8 = arith.constant 0 : index
    %c0_9 = arith.constant 0 : index
    %13 = vector.load %arg4[%c0_8, %c0_9] : memref<32x256xf32, #tpu.memory_space<vmem>>, vector<32x256xf32>
    %14 = arith.truncf %13 : vector<32x256xf32> to vector<32x256xbf16>
    %cst = arith.constant dense<0.000000e+00> : vector<8x256xf32>
    %15 = tpu.matmul %12, %14, %cst {dimension_numbers = #tpu.dot_dimension_numbers<[1], [0], [0], [1], [0, 0, 1, 1], [], []>} : vector<8x32xbf16>, vector<32x256xbf16>, vector<8x256xf32> -> vector<8x256xf32>
    %cst_10 = arith.constant 0.000000e+00 : f32
    %16 = vector.broadcast %cst_10 : f32 to vector<8x256xf32>
    %17 = arith.maximumf %15, %16 : vector<8x256xf32>
    %c0_11 = arith.constant 0 : index
    %c0_12 = arith.constant 0 : index
    %18 = vector.load %arg3[%c0_11, %c0_12] : memref<8x256xf32, #tpu.memory_space<vmem>>, vector<8x256xf32>
    tpu.vector_store %arg3[%c0_11, %c0_12], %17 {strides = array<i32>} : memref<8x256xf32, #tpu.memory_space<vmem>>, vector<8x256xf32>,
    return
  }
  func.func @transform_0(%arg0: i32) -> (i32, i32) {
    %c0_i32 = arith.constant 0 : i32
    %c0_i32_0 = arith.constant 0 : i32
    return %c0_i32, %arg0 : i32, i32
  }
  func.func @transform_1(%arg0: i32) -> (i32, i32) {
    %c0_i32 = arith.constant 0 : i32
    %c0_i32_0 = arith.constant 0 : i32
    %c0_i32_1 = arith.constant 0 : i32
    return %c0_i32, %c0_i32_0 : i32, i32
  }
  func.func @transform_2(%arg0: i32) -> (i32, i32) {
    %c0_i32 = arith.constant 0 : i32
    %c0_i32_0 = arith.constant 0 : i32
    return %c0_i32, %arg0 : i32, i32
  }
}

</mosaic_0001>

<llo_original>
// kernel: tpu_custom_call.1
$region0: #{tpu_custom_call.1}
  #allocation0 [shape = 'u32[]', space=smem, size = 0x4, offset = 0x4, fixed_abs, tag = 'smem constant byte address 0x4 - core index']
  #allocation1 [shape = 'u32[144,128]{1,0:T(1,128)}', space=vmem, size = 0x12000, scoped, tag = 'internal scratch']
  #allocation2 [shape = 'f32[32,256]{1,0:T(8,128)}', space=vmem, size = 0x8000, scoped, tag = 'scratch operand']
  %s0 = inlined_call_operand.hbm [shape: f32[8,256], index: 0, kind: input, shape index: {}]
  %s1 = inlined_call_operand.hbm [shape: bf16[8,32], index: 1, kind: input, shape index: {}]
  %s2 = inlined_call_operand.hbm [shape: f32[8,256], index: 2, kind: output, shape index: {}]
  %s3 = sld [smem:[#allocation0]]
  $region26: #{tpu_custom_call.1} parent=0
    _
  %s5 = ssub.s32 1, %s3
  %s6 = scalar_select 0, %s5, %s3
  $region1: #{tpu_custom_call.1} parent=0
    #allocation3 [shape = 'u8[8192]{0}', space=vmem, size = 0x2000, scoped, tag = 'input window, operand 0, single buffered']
    #allocation4 [shape = 's32[1]{0}', space=sflag, size = 0x4, scoped, tag = 'scoped memory for tpu_custom_call.1']
    #allocation5 [shape = 's32[1]{0}', space=sflag, size = 0x4, scoped, tag = 'scoped memory for tpu_custom_call.1']
    #allocation6 [shape = 'u8[2048]{0}', space=vmem, size = 0x800, scoped, tag = 'input window, operand 1, single buffered']
    #allocation7 [shape = 's32[1]{0}', space=sflag, size = 0x4, scoped, tag = 'scoped memory for tpu_custom_call.1']
    #allocation8 [shape = 'u8[8192]{0}', space=vmem, size = 0x2000, scoped, tag = 'output window, operand 0, single buffered']
    %7 = vsyncpa [#allocation4], 0
    %8 = vsyncpa [#allocation7], 0
    %9 = vsyncpa [#allocation5], 0
    // Predicated region
    $region2: #{tpu_custom_call.1} parent=1 // pred_check
      _
    $region3: #{tpu_custom_call.1} parent=1 // pred_check_branch
      %11 = sbr.rel (0) target = $region5
    $region4: #{tpu_custom_call.1} parent=1 // pred_region
      %s13 = ssub.s32 256, 256
      %14 = vsyncadd [#allocation4], %s13
      %s16 = sshll.u32 [#allocation3], 4
      %s17 = int_to_ptr.vmem [resolvable:$true] %s16
      %19 = dma.hbm_to_vmem [thread:$0]  %s0, 256, %s17, [#allocation4]
    $region5: #{tpu_custom_call.1} parent=1 // pred_fallthru
      _
    // Predicated region
    $region6: #{tpu_custom_call.1} parent=1 // pred_check
      _
    $region7: #{tpu_custom_call.1} parent=1 // pred_check_branch
      %21 = sbr.rel (0) target = $region9
    $region8: #{tpu_custom_call.1} parent=1 // pred_region
      %s23 = ssub.s32 64, 64
      %24 = vsyncadd [#allocation7], %s23
      %s26 = sshll.u32 [#allocation6], 4
      %s27 = int_to_ptr.vmem [resolvable:$true] %s26
      %29 = dma.hbm_to_vmem [thread:$0]  %s1, 64, %s27, [#allocation7]
    $region9: #{tpu_custom_call.1} parent=1 // pred_fallthru
      _
    // Predicated region
    $region10: #{tpu_custom_call.1} parent=1 // pred_check
      _
    $region11: #{tpu_custom_call.1} parent=1 // pred_check_branch
      %31 = sbr.rel (0) target = $region13
    $region12: #{tpu_custom_call.1} parent=1 // pred_region
      %32 = dma.done [#allocation4], 256
    $region13: #{tpu_custom_call.1} parent=1 // pred_fallthru
      _
    // Predicated region
    $region14: #{tpu_custom_call.1} parent=1 // pred_check
      _
    $region15: #{tpu_custom_call.1} parent=1 // pred_check_branch
      %34 = sbr.rel (0) target = $region17
    $region16: #{tpu_custom_call.1} parent=1 // pred_region
      %35 = dma.done [#allocation7], 64
    $region17: #{tpu_custom_call.1} parent=1 // pred_fallthru
      _
    %v37 = vld [vmem:[#allocation3] sm:$0xff]
    %v38 = vld [vmem:[#allocation3 + $0x8] sm:$0xff]
    %39 = vst [vmem:[#allocation2] sm:$0xff] %v37
    %40 = vst [vmem:[#allocation2 + $0x8] sm:$0xff] %v38
    %41 = vrot.lane.b32.xlu0 %v37, 127
    %v42 = vpop.permute.xlu0 %41
    %43 = vrot.lane.b32.xlu0 %v38, 127
    %v44 = vpop.permute.xlu0 %43
    %v45 = vlaneseq
    %v46 = vand.u32 %v45, 127
    %vm47 = vcmp.lt.s32.totalorder %v46, 127
    %v48 = vsel %vm47, %v42, %v44
    %v49 = vsel %vm47, %v44, %v42
    %50 = vst [vmem:[#allocation2 + $0x10] sm:$0xff] %v48
    %51 = vst [vmem:[#allocation2 + $0x18] sm:$0xff] %v49
    %52 = vrot.lane.b32.xlu0 %v37, 126
    %v53 = vpop.permute.xlu0 %52
    %54 = vrot.lane.b32.xlu0 %v38, 126
    %v55 = vpop.permute.xlu0 %54
    %vm56 = vcmp.lt.s32.totalorder %v46, 126
    %v57 = vsel %vm56, %v53, %v55
    %v58 = vsel %vm56, %v55, %v53
    %59 = vst [vmem:[#allocation2 + $0x20] sm:$0xff] %v57
    %60 = vst [vmem:[#allocation2 + $0x28] sm:$0xff] %v58
    %v61 = vlaneseq
    %v62 = vshrl.u32 %v61, 7
    %vm63 = vcmp.eq.s32.totalorder %v62, 0
    %v64 = vsel %vm63, 1, 0
    %v65 = vcvt.s32.f32 %v64
    %66 = vst [vmem:[#allocation2 + $0x30] sm:$0xff] %v65
    %67 = vst [vmem:[#allocation2 + $0x38] sm:$0xff] %v65
    %v68 = vld [vmem:[#allocation6] sm:$0xf]
    %v69 = vld [vmem:[#allocation2] sm:$0xff]
    %v70 = vld [vmem:[#allocation2 + $0x8] sm:$0xff]
    %v71 = vld [vmem:[#allocation2 + $0x10] sm:$0xff]
    %v72 = vld [vmem:[#allocation2 + $0x18] sm:$0xff]
    %v73 = vld [vmem:[#allocation2 + $0x20] sm:$0xff]
    %v74 = vld [vmem:[#allocation2 + $0x28] sm:$0xff]
    %v75 = vld [vmem:[#allocation2 + $0x30] sm:$0xff]
    %v76 = vld [vmem:[#allocation2 + $0x38] sm:$0xff]
    %v77 = vpack.c.bf16 %v71, %v69
    %v78 = vpack.c.bf16 %v72, %v70
    %v79 = vpack.c.bf16 %v75, %v73
    %v80 = vpack.c.bf16 %v76, %v74
    %vm81 = vcmask 261120
    %v83 = vsel %vm81, %v68, 0
    %85 = vmatprep.subr.bf16.mxu0 %v78
    %86 = vmatpush1.bf16.msra.mxu0 %v77
    %87 = vmatprep.subr.bf16.mxu0 %v80
    %88 = vmatpush1.bf16.msra.mxu0 %v79
    %89 = vmatprep.subr.bf16.mxu0 0
    %90 = vmatpush1.bf16.msra.mxu0 0
    %91 = vmatprep.subr.bf16.mxu0 0
    %92 = vmatpush1.bf16.msra.mxu0 0
    %93 = vmatprep.subr.bf16.mxu0 0
    %94 = vmatpush1.bf16.msra.mxu0 0
    %95 = vmatprep.subr.bf16.mxu0 0
    %96 = vmatpush1.bf16.msra.mxu0 0
    %97 = vmatprep.subr.bf16.mxu0 0
    %98 = vmatpush1.bf16.msra.mxu0 0
    %99 = vmatprep.subr.bf16.mxu0 0
    %100 = vmatpush1.bf16.msra.mxu0 0
    %101 = vmatprep.subr.bf16.mxu0 0
    %102 = vmatpush1.bf16.msra.mxu0 0
    %103 = vmatprep.subr.bf16.mxu0 0
    %104 = vmatpush1.bf16.msra.mxu0 0
    %105 = vmatprep.subr.bf16.mxu0 0
    %106 = vmatpush1.bf16.msra.mxu0 0
    %107 = vmatprep.subr.bf16.mxu0 0
    %108 = vmatpush1.bf16.msra.mxu0 0
    %109 = vmatprep.subr.bf16.mxu0 0
    %110 = vmatpush1.bf16.msra.mxu0 0
    %111 = vmatprep.subr.bf16.mxu0 0
    %112 = vmatpush1.bf16.msra.mxu0 0
    %113 = vmatprep.subr.bf16.mxu0 0
    %114 = vmatpush1.bf16.msra.mxu0 0
    %115 = vmatprep.subr.bf16.mxu0 0
    %116 = vmatpush1.bf16.msra.mxu0 0
    %117 = vmatprep.mubr.bf16.mxu0 0
    %118 = vmatmul.mubr.bf16.gmra.mrb[0].mxu0 %v83
    %v119 = vpop.f32.mrb[0].mxu0
    %v120 = vadd.f32 0.0, %v119
    %v121 = vpop.f32.mrb[0].mxu0
    %v122 = vadd.f32 0.0, %v121
    %v123 = vpop.f32.mrb[0].mxu0
    %v124 = vpop.f32.mrb[0].mxu0
    %125 = vdwg.mxu0
    %v126 = vmax.f32 %v120, 0.0
    %v127 = vmax.f32 %v122, 0.0
    %128 = vst [vmem:[#allocation8] sm:$0xff] %v126
    %129 = vst [vmem:[#allocation8 + $0x8] sm:$0xff] %v127
    // Predicated region
    $region18: #{tpu_custom_call.1} parent=1 // pred_check
      _
    $region19: #{tpu_custom_call.1} parent=1 // pred_check_branch
      %131 = sbr.rel (0) target = $region21
    $region20: #{tpu_custom_call.1} parent=1 // pred_region
      %s133 = ssub.s32 256, 256
      %134 = vsyncadd [#allocation5], %s133
      %s136 = sshll.u32 [#allocation8], 4
      %s137 = int_to_ptr.vmem [resolvable:$true] %s136
      %139 = dma.vmem_to_hbm [thread:$0]  %s137, 256, %s2, [#allocation5]
    $region21: #{tpu_custom_call.1} parent=1 // pred_fallthru
      _
    // Predicated region
    $region22: #{tpu_custom_call.1} parent=1 // pred_check
      _
    $region23: #{tpu_custom_call.1} parent=1 // pred_check_branch
      %141 = sbr.rel (0) target = $region25
    $region24: #{tpu_custom_call.1} parent=1 // pred_region
      %142 = dma.done [#allocation5], 256
    $region25: #{tpu_custom_call.1} parent=1 // pred_fallthru
      _
    %143 = vsyncpa [#allocation4], 1
    %144 = vsyncpa [#allocation7], 1
    %145 = vsyncpa [#allocation5], 1

</llo_original>
